<compile_context>
chip_gen: v6e
topology: v6e:2x2x1
jax: 0.10.0
libtpu: 0.0.40
codegen_flags: <defaults>
</compile_context>

<pallas_src>
import jax
import jax.numpy as jnp
from jax import lax
from jax.experimental import pallas as pl
from jax.experimental.pallas import tpu as pltpu

_SUB = 8              # sublanes per vreg tile
_LANE = 128           # lanes per vreg tile
_MAX_TILE_ROWS = 2048  # rows per grid step; 2048*128*4B = 1 MiB per input block


def _make_sq_err_kernel(rows, tile_rows, steps_per_chunk, inv_n, needs_mask):
    """Build the kernel body with static shapes/constants baked in."""

    def kernel(r_ref, t_ref, out_ref, acc_ref):
        c = pl.program_id(0)   # parallel chunk axis (sharded across TCs on v7x)
        k = pl.program_id(1)   # sequential reduction axis

        @pl.when(k == 0)
        def _():
            acc_ref[...] = jnp.zeros_like(acc_ref)

        # cast per tile (inputs stay in their native dtype in HBM)
        d = r_ref[...].astype(jnp.float32) - t_ref[...].astype(jnp.float32)

        if needs_mask:
            # zero out rows past the logical end (ragged last block / dead
            # steps of an uneven chunk split); garbage VMEM rows contribute 0.
            base = (c * steps_per_chunk + k) * tile_rows
            row = base + lax.broadcasted_iota(
                jnp.int32, (tile_rows, _LANE), 0)
            d = jnp.where(row < rows, d, 0.0)

        sq = d * d
        # Fold the big tile into the small (8,128) accumulator with pure VPU
        # adds; defer any cross-lane/sublane reduction to the finalize step.
        acc_ref[...] += sq.reshape(tile_rows // _SUB, _SUB, _LANE).sum(axis=0)

        @pl.when(k == steps_per_chunk - 1)
        def _():
            # per-chunk partial, already scaled by 1/N
            out_ref[...] = (acc_ref[...] * inv_n).reshape(1, _SUB, _LANE)

    return kernel


@jax.jit
def _mse_loss_pallas(recon, target):
    """Mean squared error over all elements, computed in a Pallas kernel."""
    n = recon.size
    flat_r = recon.reshape(-1)   # bitcast for contiguous inputs, no copy
    flat_t = target.reshape(-1)

    block_elems = _SUB * _LANE   # 1024
    pad = (-n) % block_elems
    if pad:
        # Only for ragged sizes (< 1 tile remainder); zeros add 0 to the sum.
        flat_r = jnp.pad(flat_r, (0, pad))
        flat_t = jnp.pad(flat_t, (0, pad))
    rows = (n + pad) // _LANE            # always a multiple of 8

    tile_rows = min(_MAX_TILE_ROWS, rows)           # multiple of 8
    steps_total = -(-rows // tile_rows)
    num_chunks = 2 if steps_total >= 2 else 1       # 2 TCs on v7x, else 1
    steps_per_chunk = -(-steps_total // num_chunks)
    needs_mask = (rows % tile_rows != 0) or \
                 (num_chunks * steps_per_chunk != steps_total)

    r2 = flat_r.reshape(rows, _LANE)
    t2 = flat_t.reshape(rows, _LANE)

    if num_chunks * steps_per_chunk > steps_total:
        # clamp dead trailing steps of the last chunk to a valid block index;
        # their contribution is masked to zero inside the kernel.
        def in_map(c, k):
            return (jnp.minimum(c * steps_per_chunk + k, steps_total - 1), 0)
    else:
        def in_map(c, k):
            return (c * steps_per_chunk + k, 0)

    kernel = _make_sq_err_kernel(
        rows, tile_rows, steps_per_chunk, 1.0 / float(n), needs_mask)

    itemsize = jnp.dtype(recon.dtype).itemsize
    cost = pl.CostEstimate(
        flops=3 * n,
        transcendentals=0,
        bytes_accessed=2 * n * itemsize + num_chunks * _SUB * _LANE * 4,
    )

    partials = pl.pallas_call(
        kernel,
        out_shape=jax.ShapeDtypeStruct((num_chunks, _SUB, _LANE), jnp.float32),
        grid_spec=pltpu.PrefetchScalarGridSpec(
            num_scalar_prefetch=0,
            grid=(num_chunks, steps_per_chunk),
            in_specs=[
                pl.BlockSpec((tile_rows, _LANE), in_map),
                pl.BlockSpec((tile_rows, _LANE), in_map),
            ],
            out_specs=pl.BlockSpec((1, _SUB, _LANE), lambda c, k: (c, 0, 0)),
            scratch_shapes=[pltpu.VMEM((_SUB, _LANE), jnp.float32)],
        ),
        compiler_params=pltpu.CompilerParams(
            dimension_semantics=("parallel", "arbitrary")),
        cost_estimate=cost,
    )(r2, t2)

    # tiny final reduction of per-chunk (8,128) partials (already / N)
    return jnp.sum(partials)


class Config:
    """Minimal config mirroring the fields DecodingLoss touches."""

    class criterion:
        reconstruction_metric = "mse"

    class reconstruction_constraint:
        use_constraint = False
        bound = 0.1
        start_val = 1.0
        alpha = 0.9


class DecodingLoss:
    """JAX/Pallas port of the PyTorch DecodingLoss module (forward only)."""

    def __init__(self, config):
        self.config = config
        self.beta = 1.0
        # TODO(synk): constrained-optimization branch (Constraint + SGD-based
        # ConstraintOptimizer with a learnable Lagrange multiplier) is a
        # training-time construct with internal optimizer state; not translated.
        if self.config.reconstruction_constraint.use_constraint:
            raise NotImplementedError(
                "reconstruction_constraint.use_constraint=True not supported")

    def __call__(self, reconstructions, targets):
        reconstruction_loss = _mse_loss_pallas(reconstructions, targets)
        return (self.beta * reconstruction_loss, reconstruction_loss)


if __name__ == "__main__":
    key = jax.random.PRNGKey(0)
    k1, k2 = jax.random.split(key)

    # small NCHW shapes: batch=2, channels=4, spatial=16x16
    recon = jax.random.normal(k1, (2, 4, 16, 16), dtype=jnp.float32)
    target = jax.random.normal(k2, (2, 4, 16, 16), dtype=jnp.float32)

    loss_fn = DecodingLoss(Config())
    scaled_loss, recon_loss = loss_fn(recon, target)
    jax.block_until_ready((scaled_loss, recon_loss))

    # sanity check against plain-JAX reference
    ref = jnp.mean((recon - target) ** 2)
    assert jnp.allclose(recon_loss, ref, rtol=1e-5, atol=1e-6), (recon_loss, ref)
    assert jnp.allclose(scaled_loss, ref, rtol=1e-5, atol=1e-6)

    print("KERNEL_OK")
</pallas_src>

<mosaic_0001>
module attributes {stable_mosaic.version = 11 : i64} {
  func.func @kernel(%arg0: i32, %arg1: i32, %arg2: memref<16x128xf32, #tpu.memory_space<vmem>>, %arg3: memref<16x128xf32, #tpu.memory_space<vmem>>, %arg4: memref<1x8x128xf32, #tpu.memory_space<vmem>>, %arg5: memref<8x128xf32, #tpu.memory_space<vmem>>) attributes {dimension_semantics = [#tpu.dimension_semantics<parallel>, #tpu.dimension_semantics<arbitrary>], iteration_bounds = array<i64: 1, 1>, scalar_prefetch = 0 : i64, scratch_operands = 1 : i64, tpu.core_type = #tpu.core_type<tc>, window_params = [{transform_indices = @transform_0, window_bounds = array<i64: 16, 128>}, {transform_indices = @transform_1, window_bounds = array<i64: 16, 128>}, {transform_indices = @transform_2, window_bounds = array<i64: 1, 8, 128>}]} {
    %c0_i32 = arith.constant 0 : i32
    %0 = arith.cmpi eq, %arg1, %c0_i32 : i32
    %1 = arith.extui %0 : i1 to i32
    %c0_i32_0 = arith.constant 0 : i32
    %2 = arith.cmpi ne, %1, %c0_i32_0 : i32
    scf.if %2 {
      %cst_10 = arith.constant 0.000000e+00 : f32
      %15 = vector.broadcast %cst_10 : f32 to vector<8x128xf32>
      %c0_11 = arith.constant 0 : index
      %c0_12 = arith.constant 0 : index
      %16 = vector.load %arg5[%c0_11, %c0_12] : memref<8x128xf32, #tpu.memory_space<vmem>>, vector<8x128xf32>
      tpu.vector_store %arg5[%c0_11, %c0_12], %15 {strides = array<i32>} : memref<8x128xf32, #tpu.memory_space<vmem>>, vector<8x128xf32>,
    } else {
    }
    %c0 = arith.constant 0 : index
    %c0_1 = arith.constant 0 : index
    %3 = vector.load %arg2[%c0, %c0_1] : memref<16x128xf32, #tpu.memory_space<vmem>>, vector<16x128xf32>
    %c0_2 = arith.constant 0 : index
    %c0_3 = arith.constant 0 : index
    %4 = vector.load %arg3[%c0_2, %c0_3] : memref<16x128xf32, #tpu.memory_space<vmem>>, vector<16x128xf32>
    %5 = arith.subf %3, %4 : vector<16x128xf32>
    %6 = arith.mulf %5, %5 : vector<16x128xf32>
    %c0_4 = arith.constant 0 : index
    %c0_5 = arith.constant 0 : index
    %7 = vector.load %arg5[%c0_4, %c0_5] : memref<8x128xf32, #tpu.memory_space<vmem>>, vector<8x128xf32>
    %8 = vector.shape_cast %6 : vector<16x128xf32> to vector<2x8x128xf32>
    %cst = arith.constant dense<0.000000e+00> : vector<8x128xf32>
    %9 = vector.multi_reduction <add>, %8, %cst [0] : vector<2x8x128xf32> to vector<8x128xf32>
    %10 = arith.addf %7, %9 : vector<8x128xf32>
    %c0_6 = arith.constant 0 : index
    %c0_7 = arith.constant 0 : index
    %11 = vector.load %arg5[%c0_6, %c0_7] : memref<8x128xf32, #tpu.memory_space<vmem>>, vector<8x128xf32>
    tpu.vector_store %arg5[%c0_6, %c0_7], %10 {strides = array<i32>} : memref<8x128xf32, #tpu.memory_space<vmem>>, vector<8x128xf32>,
    %c0_i32_8 = arith.constant 0 : i32
    %12 = arith.cmpi eq, %arg1, %c0_i32_8 : i32
    %13 = arith.extui %12 : i1 to i32
    %c0_i32_9 = arith.constant 0 : i32
    %14 = arith.cmpi ne, %13, %c0_i32_9 : i32
    scf.if %14 {
      %c0_10 = arith.constant 0 : index
      %c0_11 = arith.constant 0 : index
      %15 = vector.load %arg5[%c0_10, %c0_11] : memref<8x128xf32, #tpu.memory_space<vmem>>, vector<8x128xf32>
      %cst_12 = arith.constant 4.8828125E-4 : f32
      %16 = vector.broadcast %cst_12 : f32 to vector<8x128xf32>
      %17 = arith.mulf %15, %16 : vector<8x128xf32>
      %18 = vector.shape_cast %17 : vector<8x128xf32> to vector<1x8x128xf32>
      %c0_13 = arith.constant 0 : index
      %c0_14 = arith.constant 0 : index
      %c0_15 = arith.constant 0 : index
      %19 = vector.load %arg4[%c0_13, %c0_14, %c0_15] : memref<1x8x128xf32, #tpu.memory_space<vmem>>, vector<1x8x128xf32>
      tpu.vector_store %arg4[%c0_13, %c0_14, %c0_15], %18 {strides = array<i32>} : memref<1x8x128xf32, #tpu.memory_space<vmem>>, vector<1x8x128xf32>,
    } else {
    }
    return
  }
  func.func @transform_0(%arg0: i32, %arg1: i32) -> (i32, i32) {
    %c1_i32 = arith.constant 1 : i32
    %0 = arith.muli %arg0, %c1_i32 : i32
    %1 = arith.addi %0, %arg1 : i32
    %c0_i32 = arith.constant 0 : i32
    %c0_i32_0 = arith.constant 0 : i32
    return %1, %c0_i32 : i32, i32
  }
  func.func @transform_1(%arg0: i32, %arg1: i32) -> (i32, i32) {
    %c1_i32 = arith.constant 1 : i32
    %0 = arith.muli %arg0, %c1_i32 : i32
    %1 = arith.addi %0, %arg1 : i32
    %c0_i32 = arith.constant 0 : i32
    %c0_i32_0 = arith.constant 0 : i32
    return %1, %c0_i32 : i32, i32
  }
  func.func @transform_2(%arg0: i32, %arg1: i32) -> (i32, i32, i32) {
    %c0_i32 = arith.constant 0 : i32
    %c0_i32_0 = arith.constant 0 : i32
    %c0_i32_1 = arith.constant 0 : i32
    return %arg0, %c0_i32, %c0_i32_0 : i32, i32, i32
  }
}

</mosaic_0001>

<llo_original>
// kernel: _mse_loss_pallas.1
$region0: #{_mse_loss_pallas.1}
  #allocation0 [shape = 'u32[]', space=smem, size = 0x4, offset = 0x4, fixed_abs, tag = 'smem constant byte address 0x4 - core index']
  #allocation1 [shape = 'u32[144,128]{1,0:T(1,128)}', space=vmem, size = 0x12000, scoped, tag = 'internal scratch']
  #allocation2 [shape = 'f32[8,128]{1,0:T(8,128)}', space=vmem, size = 0x1000, scoped, tag = 'scratch operand']
  %s0 = inlined_call_operand.vmem [shape: f32[16,128], index: 0, kind: input, shape index: {}]
  %s1 = inlined_call_operand.vmem [shape: f32[16,128], index: 1, kind: input, shape index: {}]
  %s2 = inlined_call_operand.vmem [shape: f32[1,8,128], index: 2, kind: output, shape index: {}]
  %s3 = sld [smem:[#allocation0]]
  $region26: #{_mse_loss_pallas.1} parent=0
    _
  %s5 = ssub.s32 1, %s3
  %s6 = scalar_select 0, %s5, %s3
  // Predicated region
  $region2: #{_mse_loss_pallas.1} parent=0 // pred_check
    _
  $region3: #{_mse_loss_pallas.1} parent=0 // pred_check_branch
    %8 = sbr.rel (0) target = $region5
  $region4: #{_mse_loss_pallas.1} parent=0 // pred_region
    %s9 = sadd.s32 0, 0
    %s10 = smul.u32 2, %s9
    %p11 = scmp.lt.s32.totalorder %s10, 1
    %s12 = scalar_select %p11, %s10, 1
    %s13 = smul.addr %s12, 8
    %s14 = scalar_lea.vmem %s0, %s13
    %s15 = sadd.s32 0, 0
    %s16 = smul.u32 2, %s15
  $region5: #{_mse_loss_pallas.1} parent=0 // pred_fallthru
    _
  // Predicated region
  $region6: #{_mse_loss_pallas.1} parent=0 // pred_check
    _
  $region7: #{_mse_loss_pallas.1} parent=0 // pred_check_branch
    %18 = sbr.rel (0) target = $region9
  $region8: #{_mse_loss_pallas.1} parent=0 // pred_region
    %s19 = sadd.s32 0, 0
    %s20 = smul.u32 2, %s19
    %p21 = scmp.lt.s32.totalorder %s20, 1
    %s22 = scalar_select %p21, %s20, 1
    %s23 = smul.addr %s22, 8
    %s24 = scalar_lea.vmem %s1, %s23
    %s25 = sadd.s32 0, 0
    %s26 = smul.u32 2, %s25
  $region9: #{_mse_loss_pallas.1} parent=0 // pred_fallthru
    _
  %s27 = sadd.s32 0, 0
  %s28 = smul.u32 2, %s27
  %p29 = scmp.lt.s32.totalorder %s28, 1
  %s30 = scalar_select %p29, %s28, 1
  %s31 = smul.addr %s30, 8
  %s32 = scalar_lea.vmem %s0, %s31
  %s33 = sadd.s32 0, 0
  %s34 = smul.u32 2, %s33
  %p35 = scmp.lt.s32.totalorder %s34, 1
  %s36 = scalar_select %p35, %s34, 1
  %s37 = smul.addr %s36, 8
  %s38 = scalar_lea.vmem %s1, %s37
  %s39 = sadd.s32 0, 0
  %s40 = smul.u32 2, %s39
  %p41 = scmp.lt.s32.totalorder %s40, 1
  %s42 = scalar_select %p41, %s40, 1
  %s43 = smul.addr %s42, 8
  %s44 = scalar_lea.vmem %s0, %s43
  %s45 = sadd.s32 0, 0
  %s46 = smul.u32 2, %s45
  %s47 = sadd.s32 0, 0
  %s48 = smul.u32 2, %s47
  %p49 = scmp.lt.s32.totalorder %s48, 1
  %s50 = scalar_select %p49, %s48, 1
  %s51 = smul.addr %s50, 8
  %s52 = scalar_lea.vmem %s1, %s51
  %s53 = sadd.s32 0, 0
  %s54 = smul.u32 2, %s53
  %p55 = scmp.eq.s32.totalorder 0, 0
  // Predicated region
  $region10: #{_mse_loss_pallas.1} parent=0 // pred_check
    %p56 = pneg %p55
  $region11: #{_mse_loss_pallas.1} parent=0 // pred_check_branch
    %58 = sbr.rel (%p56) target = $region13
  $region12: #{_mse_loss_pallas.1} parent=0 // pred_region
    %59 = vst [vmem:[#allocation2] sm:$0xff] 0.0
  $region13: #{_mse_loss_pallas.1} parent=0 // pred_fallthru
    _
  %v60 = vld [vmem:[%s44] sm:$0xff]
  %v61 = vld [vmem:[%s44 + $0x8] sm:$0xff]
  %v62 = vld [vmem:[%s52] sm:$0xff]
  %v63 = vld [vmem:[%s52 + $0x8] sm:$0xff]
  %v64 = vsub.f32 %v60, %v62
  %v65 = vsub.f32 %v61, %v63
  %v66 = vmul.f32 %v64, %v64
  %v67 = vmul.f32 %v65, %v65
  %v68 = vld [vmem:[#allocation2] sm:$0xff]
  %v69 = vadd.f32 %v66, %v67
  %v70 = vadd.f32 %v68, %v69
  %71 = vst [vmem:[#allocation2] sm:$0xff] %v70
  // Predicated region
  $region14: #{_mse_loss_pallas.1} parent=0 // pred_check
    %p72 = pneg %p55
  $region15: #{_mse_loss_pallas.1} parent=0 // pred_check_branch
    %74 = sbr.rel (%p72) target = $region17
  $region16: #{_mse_loss_pallas.1} parent=0 // pred_region
    %v75 = vld [vmem:[#allocation2] sm:$0xff]
    %v76 = vmul.f32 %v75, 0.00048828125
    %77 = vst [vmem:[%s2] sm:$0xff] %v76
  $region17: #{_mse_loss_pallas.1} parent=0 // pred_fallthru
    _
  // Predicated region
  $region18: #{_mse_loss_pallas.1} parent=0 // pred_check
    _
  $region19: #{_mse_loss_pallas.1} parent=0 // pred_check_branch
    %79 = sbr.rel (0) target = $region21
  $region20: #{_mse_loss_pallas.1} parent=0 // pred_region
    _
  $region21: #{_mse_loss_pallas.1} parent=0 // pred_fallthru
    _
  // Predicated region
  $region22: #{_mse_loss_pallas.1} parent=0 // pred_check
    _
  $region23: #{_mse_loss_pallas.1} parent=0 // pred_check_branch
    %81 = sbr.rel (0) target = $region25
  $region24: #{_mse_loss_pallas.1} parent=0 // pred_region
    _
  $region25: #{_mse_loss_pallas.1} parent=0 // pred_fallthru
    _

</llo_original>
